<compile_context>
chip_gen: v7x
topology: tpu7x:2x2x1
jax: 0.10.0
libtpu: 0.0.40
codegen_flags: <defaults>
</compile_context>

<pallas_src>
import jax
import jax.numpy as jnp
from jax import lax
from jax.experimental import pallas as pl
from jax.experimental.pallas import tpu as pltpu


def _angular_loss_kernel(x_ref, t_ref, o_ref):
    # x_ref, t_ref: (1, C, TILE) blocks; o_ref: (1, 1, TILE) f32 partial sums
    # (resident across the pixel-tile reduction axis).
    i = pl.program_id(1)

    @pl.when(i == 0)
    def _():
        o_ref[...] = jnp.zeros_like(o_ref)

    # Upcast after load (halves HBM traffic if inputs are bf16; no-op for f32).
    x = jnp.maximum(x_ref[...].astype(jnp.float32), 1e-10)  # (1, C, TILE)
    t = jnp.maximum(t_ref[...].astype(jnp.float32), 1e-10)

    sxx = jnp.sum(x * x, axis=1, keepdims=True)  # (1, 1, TILE)
    stt = jnp.sum(t * t, axis=1, keepdims=True)
    sxt = jnp.sum(x * t, axis=1, keepdims=True)

    # Exact rsqrt; keep the two rsqrts separate (rsqrt(sxx*stt) can underflow).
    dots = sxt * lax.rsqrt(sxx) * lax.rsqrt(stt)  # per-pixel cosine, (1, 1, TILE)
    o_ref[...] += dots


def _pick_tile(hw, max_tile=8192):
    """Largest legal lane tile: full row if it fits, else a multiple of 128
    dividing hw, else fall back to the full row."""
    if hw <= max_tile:
        return hw
    t = (max_tile // 128) * 128
    while t >= 128:
        if hw % t == 0:
            return t
        t -= 128
    return hw


def angular_loss(x, t, *, max_tile=8192):
    """x, t: (B, C, H, W) float arrays. Returns scalar f32 loss."""
    assert x.shape == t.shape
    b, c, h, w = x.shape
    hw = h * w
    n = b * hw
    tile = _pick_tile(hw, max_tile)

    # Free reshape (no transpose, no extra HBM round-trip).
    x3 = x.reshape(b, c, hw)
    t3 = t.reshape(b, c, hw)

    partials = pl.pallas_call(
        _angular_loss_kernel,
        out_shape=jax.ShapeDtypeStruct((b, 1, tile), jnp.float32),
        grid_spec=pltpu.PrefetchScalarGridSpec(
            num_scalar_prefetch=0,
            grid=(b, hw // tile),
            in_specs=[
                pl.BlockSpec((1, c, tile), lambda bi, i: (bi, 0, i)),
                pl.BlockSpec((1, c, tile), lambda bi, i: (bi, 0, i)),
            ],
            out_specs=pl.BlockSpec((1, 1, tile), lambda bi, i: (bi, 0, 0)),
        ),
        compiler_params=pltpu.CompilerParams(
            # B axis parallel (megacore / v7x 2nd TC), pixel-tile axis reduction.
            dimension_semantics=("parallel", "arbitrary"),
        ),
    )(x3, t3)

    # Tiny epilogue in JAX: cross-lane reduce of B*tile partials + 1 - mean.
    return jnp.float32(1.0) - jnp.sum(partials) / jnp.float32(n)


def angular_loss_ref(x, t):
    """Pure-JAX reference mirroring the PyTorch module."""
    def normalize(v):
        v = jnp.maximum(v, 1e-10)
        vlen = jnp.sqrt(jnp.sum(v * v, axis=1, keepdims=True))
        return v / vlen

    xn = normalize(x)
    tn = normalize(t)
    return 1.0 - jnp.mean(jnp.sum(xn * tn, axis=1))


if __name__ == "__main__":
    key = jax.random.PRNGKey(0)
    k1, k2 = jax.random.split(key)
    B, C, H, W = 2, 4, 16, 16
    x = jax.random.normal(k1, (B, C, H, W), dtype=jnp.float32)
    t = jax.random.normal(k2, (B, C, H, W), dtype=jnp.float32)

    loss = jax.block_until_ready(angular_loss(x, t))
    ref = jax.block_until_ready(angular_loss_ref(x, t))

    assert jnp.allclose(loss, ref, rtol=1e-5, atol=1e-5), (loss, ref)
    print("KERNEL_OK")
</pallas_src>

<mosaic_0001>
module attributes {stable_mosaic.version = 11 : i64} {
  func.func @_angular_loss_kernel(%arg0: i32, %arg1: i32, %arg2: memref<1x4x256xf32, #tpu.memory_space<vmem>>, %arg3: memref<1x4x256xf32, #tpu.memory_space<vmem>>, %arg4: memref<1x1x256xf32, #tpu.memory_space<vmem>>) attributes {dimension_semantics = [#tpu.dimension_semantics<parallel>, #tpu.dimension_semantics<arbitrary>], iteration_bounds = array<i64: 2, 1>, scalar_prefetch = 0 : i64, scratch_operands = 0 : i64, tpu.core_type = #tpu.core_type<tc>, window_params = [{transform_indices = @transform_0, window_bounds = array<i64: 1, 4, 256>}, {transform_indices = @transform_1, window_bounds = array<i64: 1, 4, 256>}, {transform_indices = @transform_2, window_bounds = array<i64: 1, 1, 256>}]} {
    %c0_i32 = arith.constant 0 : i32
    %0 = arith.cmpi eq, %arg1, %c0_i32 : i32
    %1 = arith.extui %0 : i1 to i32
    %c0_i32_0 = arith.constant 0 : i32
    %2 = arith.cmpi ne, %1, %c0_i32_0 : i32
    scf.if %2 {
      %cst_16 = arith.constant 0.000000e+00 : f32
      %25 = vector.broadcast %cst_16 : f32 to vector<1x1x256xf32>
      %c0_17 = arith.constant 0 : index
      %c0_18 = arith.constant 0 : index
      %c0_19 = arith.constant 0 : index
      %26 = vector.load %arg4[%c0_17, %c0_18, %c0_19] : memref<1x1x256xf32, #tpu.memory_space<vmem>>, vector<1x1x256xf32>
      tpu.vector_store %arg4[%c0_17, %c0_18, %c0_19], %25 {strides = array<i32>} : memref<1x1x256xf32, #tpu.memory_space<vmem>>, vector<1x1x256xf32>,
    } else {
    }
    %c0 = arith.constant 0 : index
    %c0_1 = arith.constant 0 : index
    %c0_2 = arith.constant 0 : index
    %3 = vector.load %arg2[%c0, %c0_1, %c0_2] : memref<1x4x256xf32, #tpu.memory_space<vmem>>, vector<1x4x256xf32>
    %cst = arith.constant 1.000000e-10 : f32
    %4 = vector.broadcast %cst : f32 to vector<1x4x256xf32>
    %5 = arith.maximumf %3, %4 : vector<1x4x256xf32>
    %c0_3 = arith.constant 0 : index
    %c0_4 = arith.constant 0 : index
    %c0_5 = arith.constant 0 : index
    %6 = vector.load %arg3[%c0_3, %c0_4, %c0_5] : memref<1x4x256xf32, #tpu.memory_space<vmem>>, vector<1x4x256xf32>
    %cst_6 = arith.constant 1.000000e-10 : f32
    %7 = vector.broadcast %cst_6 : f32 to vector<1x4x256xf32>
    %8 = arith.maximumf %6, %7 : vector<1x4x256xf32>
    %9 = arith.mulf %5, %5 : vector<1x4x256xf32>
    %cst_7 = arith.constant dense<0.000000e+00> : vector<1x256xf32>
    %10 = vector.multi_reduction <add>, %9, %cst_7 [1] : vector<1x4x256xf32> to vector<1x256xf32>
    %11 = vector.shape_cast %10 : vector<1x256xf32> to vector<1x1x256xf32>
    %12 = arith.mulf %8, %8 : vector<1x4x256xf32>
    %cst_8 = arith.constant dense<0.000000e+00> : vector<1x256xf32>
    %13 = vector.multi_reduction <add>, %12, %cst_8 [1] : vector<1x4x256xf32> to vector<1x256xf32>
    %14 = vector.shape_cast %13 : vector<1x256xf32> to vector<1x1x256xf32>
    %15 = arith.mulf %5, %8 : vector<1x4x256xf32>
    %cst_9 = arith.constant dense<0.000000e+00> : vector<1x256xf32>
    %16 = vector.multi_reduction <add>, %15, %cst_9 [1] : vector<1x4x256xf32> to vector<1x256xf32>
    %17 = vector.shape_cast %16 : vector<1x256xf32> to vector<1x1x256xf32>
    %18 = math.rsqrt %11 : vector<1x1x256xf32>
    %19 = arith.mulf %17, %18 : vector<1x1x256xf32>
    %20 = math.rsqrt %14 : vector<1x1x256xf32>
    %21 = arith.mulf %19, %20 : vector<1x1x256xf32>
    %c0_10 = arith.constant 0 : index
    %c0_11 = arith.constant 0 : index
    %c0_12 = arith.constant 0 : index
    %22 = vector.load %arg4[%c0_10, %c0_11, %c0_12] : memref<1x1x256xf32, #tpu.memory_space<vmem>>, vector<1x1x256xf32>
    %23 = arith.addf %22, %21 : vector<1x1x256xf32>
    %c0_13 = arith.constant 0 : index
    %c0_14 = arith.constant 0 : index
    %c0_15 = arith.constant 0 : index
    %24 = vector.load %arg4[%c0_13, %c0_14, %c0_15] : memref<1x1x256xf32, #tpu.memory_space<vmem>>, vector<1x1x256xf32>
    tpu.vector_store %arg4[%c0_13, %c0_14, %c0_15], %23 {strides = array<i32>} : memref<1x1x256xf32, #tpu.memory_space<vmem>>, vector<1x1x256xf32>,
    return
  }
  func.func @transform_0(%arg0: i32, %arg1: i32) -> (i32, i32, i32) {
    %c0_i32 = arith.constant 0 : i32
    %c0_i32_0 = arith.constant 0 : i32
    return %arg0, %c0_i32, %arg1 : i32, i32, i32
  }
  func.func @transform_1(%arg0: i32, %arg1: i32) -> (i32, i32, i32) {
    %c0_i32 = arith.constant 0 : i32
    %c0_i32_0 = arith.constant 0 : i32
    return %arg0, %c0_i32, %arg1 : i32, i32, i32
  }
  func.func @transform_2(%arg0: i32, %arg1: i32) -> (i32, i32, i32) {
    %c0_i32 = arith.constant 0 : i32
    %c0_i32_0 = arith.constant 0 : i32
    %c0_i32_1 = arith.constant 0 : i32
    return %arg0, %c0_i32, %c0_i32_0 : i32, i32, i32
  }
}

</mosaic_0001>

<llo_original>
// kernel: tpu_custom_call.1
$region0: #{tpu_custom_call.1}
  #allocation0 [shape = 'u32[]', space=smem, size = 0x4, offset = 0x4, fixed_abs, tag = 'smem constant byte address 0x4 - core index']
  #allocation1 [shape = 'u32[144,128]{1,0:T(1,128)}', space=vmem, size = 0x12000, scoped, tag = 'internal scratch']
  %s0 = inlined_call_operand.hbm [shape: f32[2,4,256], index: 0, kind: input, shape index: {}]
  %s1 = inlined_call_operand.hbm [shape: f32[2,4,256], index: 1, kind: input, shape index: {}]
  %s2 = inlined_call_operand.hbm [shape: f32[2,1,256], index: 2, kind: output, shape index: {}]
  %s3 = sld [smem:[#allocation0]]
  $region53: #{tpu_custom_call.1} parent=0
    _
  %s5 = ssub.s32 1, %s3
  %s6 = scalar_select 0, %s5, %s3
  $region1: #{tpu_custom_call.1} parent=0
    #allocation2 [shape = 'u8[8192]{0}', space=vmem, size = 0x2000, scoped, tag = 'input window, operand 0']
    #allocation3 [shape = 's32[2]{0}', space=sflag, size = 0x8, scoped, tag = 'scoped memory for tpu_custom_call.1']
    #allocation4 [shape = 's32[2]{0}', space=sflag, size = 0x8, scoped, tag = 'scoped memory for tpu_custom_call.1']
    #allocation5 [shape = 'u8[8192]{0}', space=vmem, size = 0x2000, scoped, tag = 'input window, operand 1']
    #allocation6 [shape = 's32[2]{0}', space=sflag, size = 0x8, scoped, tag = 'scoped memory for tpu_custom_call.1']
    #allocation7 [shape = 'u8[2048]{0}', space=vmem, size = 0x800, scoped, tag = 'output window, operand 0']
    %7 = vsyncpa [#allocation3], 0
    %s8 = scalar_lea.sflag [#allocation3], 1
    %9 = vsyncpa %s8, 0
    %10 = vsyncpa [#allocation6], 0
    %s11 = scalar_lea.sflag [#allocation6], 1
    %12 = vsyncpa %s11, 0
    %13 = vsyncpa [#allocation4], 0
    %s14 = scalar_lea.sflag [#allocation4], 1
    %15 = vsyncpa %s14, 0
    loop: start=0, step=1, limit=4
    $region2: #{tpu_custom_call.1} parent=1 // loop_pre_header
      _
    $region3: #{tpu_custom_call.1} parent=1 // loop_header
      %s17 = sphi 0, %s21
      %p18 = scmp.ge.s32.totalorder %s17, 4
      %s24 = sphi 0, %s36
      %s25 = sphi 0, %s32
      %s26 = sphi 0, %s24
      %s27 = sphi 0, %s25
      %s28 = sphi 0, %s26
      %s29 = sphi 0, %s27
      %s41 = sphi 0, %s43
      %s44 = sphi 0, %s41
      %s45 = sphi 0, %s44
      %s61 = sphi 0, %s45
      %s69 = sphi 0, %s71
      %s72 = sphi 0, %s69
      %s73 = sphi 0, %s72
      %s89 = sphi 0, %s73
      %s95 = sphi 0, %s97
      %s98 = sphi 0, %s95
      %s99 = sphi 0, %s98
      %s115 = sphi 0, %s99
    $region4: #{tpu_custom_call.1} parent=1 // loop_header_branch
      %20 = sbr.rel (%p18) target = $region8
    $region5: #{tpu_custom_call.1} parent=1 // loop_body
      %s22 = ssub.s32 %s17, 1
      %s23 = ssub.s32 %s17, 2
      %s30 = sadd.s32 1, %s25
      %p31 = scmp.ge.s32.totalorder %s30, 1
      %s32 = scalar_select %p31, 0, %s30
      %s33 = sadd.s32 1, %s24
      %s34 = scalar_select %p31, %s33, %s24
      %p35 = scmp.ge.s32.totalorder %s34, 2
      %s36 = scalar_select %p35, 0, %s34
      %s37 = ssub.s32 %s24, %s36
      %s38 = ssub.s32 %s25, %s32
      %s39 = sor.u32 %s37, %s38
      %p40 = scmp.eq.s32.totalorder %s39, 0
      %s42 = sadd.s32 %s41, 1
      %s43 = scalar_select %p40, %s41, %s42
      %p46 = pneg %p40
      %p47 = scmp.eq.s32.totalorder %s17, 1
      %p48 = por %p46, %p47
      %p49 = scmp.ne.s32.totalorder %s41, %s44
      %p50 = scmp.eq.s32.totalorder %s17, 0
      %p51 = por %p49, %p50
      %p52 = scmp.ne.s32.totalorder %s41, %s44
      %p53 = scmp.eq.s32.totalorder %s22, 1
      %p54 = por %p52, %p53
      %p55 = scmp.ne.s32.totalorder %s44, %s45
      %p56 = scmp.eq.s32.totalorder %s22, 0
      %p57 = por %p55, %p56
      %p58 = scmp.ne.s32.totalorder %s44, %s45
      %p59 = scmp.eq.s32.totalorder %s23, 1
      %p60 = por %p58, %p59
      %p62 = scmp.ne.s32.totalorder %s45, %s61
      %p63 = scmp.eq.s32.totalorder %s23, 0
      %p64 = por %p62, %p63
      %s65 = ssub.s32 %s24, %s36
      %s66 = ssub.s32 %s25, %s32
      %s67 = sor.u32 %s65, %s66
      %p68 = scmp.eq.s32.totalorder %s67, 0
      %s70 = sadd.s32 %s69, 1
      %s71 = scalar_select %p68, %s69, %s70
      %p74 = pneg %p68
      %p75 = scmp.eq.s32.totalorder %s17, 1
      %p76 = por %p74, %p75
      %p77 = scmp.ne.s32.totalorder %s69, %s72
      %p78 = scmp.eq.s32.totalorder %s17, 0
      %p79 = por %p77, %p78
      %p80 = scmp.ne.s32.totalorder %s69, %s72
      %p81 = scmp.eq.s32.totalorder %s22, 1
      %p82 = por %p80, %p81
      %p83 = scmp.ne.s32.totalorder %s72, %s73
      %p84 = scmp.eq.s32.totalorder %s22, 0
      %p85 = por %p83, %p84
      %p86 = scmp.ne.s32.totalorder %s72, %s73
      %p87 = scmp.eq.s32.totalorder %s23, 1
      %p88 = por %p86, %p87
      %p90 = scmp.ne.s32.totalorder %s73, %s89
      %p91 = scmp.eq.s32.totalorder %s23, 0
      %p92 = por %p90, %p91
      %s93 = ssub.s32 %s24, %s36
      %p94 = scmp.eq.s32.totalorder %s93, 0
      %s96 = sadd.s32 %s95, 1
      %s97 = scalar_select %p94, %s95, %s96
      %p100 = pneg %p94
      %p101 = scmp.eq.s32.totalorder %s17, 1
      %p102 = por %p100, %p101
      %p103 = scmp.ne.s32.totalorder %s95, %s98
      %p104 = scmp.eq.s32.totalorder %s17, 0
      %p105 = por %p103, %p104
      %p106 = scmp.ne.s32.totalorder %s95, %s98
      %p107 = scmp.eq.s32.totalorder %s22, 1
      %p108 = por %p106, %p107
      %p109 = scmp.ne.s32.totalorder %s98, %s99
      %p110 = scmp.eq.s32.totalorder %s22, 0
      %p111 = por %p109, %p110
      %p112 = scmp.ne.s32.totalorder %s98, %s99
      %p113 = scmp.eq.s32.totalorder %s23, 1
      %p114 = por %p112, %p113
      %p116 = scmp.ne.s32.totalorder %s99, %s115
      %p117 = scmp.eq.s32.totalorder %s23, 0
      %p118 = por %p116, %p117
      %p119 = scmp.le.s32.totalorder 1, %s17
      %p120 = scmp.lt.s32.totalorder %s17, 3
      %p121 = pnand %p119, %p120
      %p122 = pneg %p121
      // Predicated region
      $region9: #{tpu_custom_call.1} parent=5 // pred_check
        _
      $region10: #{tpu_custom_call.1} parent=5 // pred_check_branch
        %124 = sbr.rel (%p121) target = $region12
      $region11: #{tpu_custom_call.1} parent=5 // pred_region
        %s125 = ssub.s32 %s17, 1
      $region12: #{tpu_custom_call.1} parent=5 // pred_fallthru
        _
      %p126 = scmp.lt.s32.totalorder %s17, 2
      // Predicated region
      $region13: #{tpu_custom_call.1} parent=5 // pred_check
        %p127 = pneg %p126
      $region14: #{tpu_custom_call.1} parent=5 // pred_check_branch
        %129 = sbr.rel (%p127) target = $region16
      $region15: #{tpu_custom_call.1} parent=5 // pred_region
        // Predicated region
        $region17: #{tpu_custom_call.1} parent=15 // pred_check
          %p130 = pneg %p51
        $region18: #{tpu_custom_call.1} parent=15 // pred_check_branch
          %132 = sbr.rel (%p130) target = $region20
        $region19: #{tpu_custom_call.1} parent=15 // pred_region
          %s133 = sand.u32 %s41, 1
          %s134 = scalar_lea.sflag [#allocation3], %s133
          %s135 = sand.u32 %s41, 1
          %s136 = smul.addr %s135, 8
          %s137 = scalar_lea.vmem [#allocation2], %s136
          %s138 = smul.u32 2, %s25
          %s140 = ssub.s32 128, 128
          %141 = vsyncadd %s134, %s140
          %s142 = smul.addr %s24, 2
          %s143 = sadd.s32 %s138, %s142
          %s144 = smul.addr %s143, 64
          %s145 = scalar_lea.hbm %s0, %s144
          %s147 = sshll.u32 %s137, 4
          %s148 = int_to_ptr.vmem [resolvable:$true] %s147
          %150 = dma.hbm_to_vmem [thread:$0]  %s145, 128, %s148, %s134
        $region20: #{tpu_custom_call.1} parent=15 // pred_fallthru
          _
        // Predicated region
        $region21: #{tpu_custom_call.1} parent=15 // pred_check
          %p151 = pneg %p79
        $region22: #{tpu_custom_call.1} parent=15 // pred_check_branch
          %153 = sbr.rel (%p151) target = $region24
        $region23: #{tpu_custom_call.1} parent=15 // pred_region
          %s154 = sand.u32 %s69, 1
          %s155 = scalar_lea.sflag [#allocation6], %s154
          %s156 = sand.u32 %s69, 1
          %s157 = smul.addr %s156, 8
          %s158 = scalar_lea.vmem [#allocation5], %s157
          %s159 = smul.u32 2, %s25
          %s161 = ssub.s32 128, 128
          %162 = vsyncadd %s155, %s161
          %s163 = smul.addr %s24, 2
          %s164 = sadd.s32 %s159, %s163
          %s165 = smul.addr %s164, 64
          %s166 = scalar_lea.hbm %s1, %s165
          %s168 = sshll.u32 %s158, 4
          %s169 = int_to_ptr.vmem [resolvable:$true] %s168
          %171 = dma.hbm_to_vmem [thread:$0]  %s166, 128, %s169, %s155
        $region24: #{tpu_custom_call.1} parent=15 // pred_fallthru
          _
      $region16: #{tpu_custom_call.1} parent=5 // pred_fallthru
        _
      %p172 = scmp.le.s32.totalorder 1, %s17
      %p173 = scmp.lt.s32.totalorder %s17, 3
      %p174 = pnand %p172, %p173
      %p175 = pneg %p174
      // Predicated region
      $region25: #{tpu_custom_call.1} parent=5 // pred_check
        _
      $region26: #{tpu_custom_call.1} parent=5 // pred_check_branch
        %177 = sbr.rel (%p174) target = $region28
      $region27: #{tpu_custom_call.1} parent=5 // pred_region
        %s178 = ssub.s32 %s17, 1
        %s179 = sand.u32 %s44, 1
        %s180 = scalar_lea.sflag [#allocation3], %s179
        %s181 = sand.u32 %s44, 1
        %s182 = smul.addr %s181, 8
        %s183 = scalar_lea.vmem [#allocation2], %s182
        // Predicated region
        $region29: #{tpu_custom_call.1} parent=27 // pred_check
          %p184 = pneg %p57
        $region30: #{tpu_custom_call.1} parent=27 // pred_check_branch
          %186 = sbr.rel (%p184) target = $region32
        $region31: #{tpu_custom_call.1} parent=27 // pred_region
          %187 = dma.done %s180, 128
        $region32: #{tpu_custom_call.1} parent=27 // pred_fallthru
          _
        %s188 = sand.u32 %s72, 1
        %s189 = scalar_lea.sflag [#allocation6], %s188
        %s190 = sand.u32 %s72, 1
        %s191 = smul.addr %s190, 8
        %s192 = scalar_lea.vmem [#allocation5], %s191
        // Predicated region
        $region33: #{tpu_custom_call.1} parent=27 // pred_check
          %p193 = pneg %p85
        $region34: #{tpu_custom_call.1} parent=27 // pred_check_branch
          %195 = sbr.rel (%p193) target = $region36
        $region35: #{tpu_custom_call.1} parent=27 // pred_region
          %196 = dma.done %s189, 128
        $region36: #{tpu_custom_call.1} parent=27 // pred_fallthru
          _
        %s197 = sand.u32 %s44, 1
        %s198 = scalar_lea.sflag [#allocation3], %s197
        %s199 = sand.u32 %s44, 1
        %s200 = smul.addr %s199, 8
        %s201 = scalar_lea.vmem [#allocation2], %s200
        %p202 = pneg %p57
        %p203 = pneg %p54
        %s204 = sand.u32 %s72, 1
        %s205 = scalar_lea.sflag [#allocation6], %s204
        %s206 = sand.u32 %s72, 1
        %s207 = smul.addr %s206, 8
        %s208 = scalar_lea.vmem [#allocation5], %s207
        %p209 = pneg %p85
        %p210 = pneg %p82
        %p211 = pneg %p111
        %p212 = pneg %p108
        %s213 = sand.u32 %s98, 1
        %s214 = scalar_lea.sflag [#allocation4], %s213
        %s215 = sand.u32 %s98, 1
        %s216 = smul.addr %s215, 2
        %s217 = scalar_lea.vmem [#allocation7], %s216
        %s218 = smul.u32 2, %s27
        %s219 = smul.u32 2, %s27
        %p220 = scmp.eq.s32.totalorder %s27, 0
        // Predicated region
        $region37: #{tpu_custom_call.1} parent=27 // pred_check
          %p221 = pneg %p220
        $region38: #{tpu_custom_call.1} parent=27 // pred_check_branch
          %223 = sbr.rel (%p221) target = $region40
        $region39: #{tpu_custom_call.1} parent=27 // pred_region
          %v224 = vlaneseq
          %vm225 = vcmp.ge.s32.totalorder %v224, 0
          %vm226 = vcmp.lt.s32.totalorder %v224, 256
          %vm227 = vmand %vm225, %vm226
          %228 = vst.msk [vmem:[%s217] sm:$0x3] %vm227, 0.0
        $region40: #{tpu_custom_call.1} parent=27 // pred_fallthru
          _
        %v229 = vld [vmem:[%s183] sm:$0xff]
        %v230 = vmax.f32 %v229, 1e-10
        %v231 = vld [vmem:[%s192] sm:$0xff]
        %v232 = vmax.f32 %v231, 1e-10
        %v233 = vmul.f32 %v230, %v230
        %v235 = vcombine.high %v233, %v233
        %vm237 = vcmask 1043456
        %v238 = vsel %vm237, %v233, 0.0
        %v239 = vrot.slane %v238, 4
        %v240 = vadd.f32 %v238, %v239
        %v241 = vrot.slane %v240, 2
        %v242 = vadd.f32 %v240, %v241
        %v243 = vrot.slane %v242, 1
        %v244 = vadd.f32 %v242, %v243
        %v245 = vsel %vm237, %v235, 0.0
        %v246 = vrot.slane %v245, 4
        %v247 = vadd.f32 %v245, %v246
        %v248 = vrot.slane %v247, 2
        %v249 = vadd.f32 %v247, %v248
        %v250 = vrot.slane %v249, 1
        %v251 = vadd.f32 %v249, %v250
        %v252 = vmul.f32 %v232, %v232
        %v254 = vcombine.high %v252, %v252
        %v256 = vsel %vm237, %v252, 0.0
        %v257 = vrot.slane %v256, 4
        %v258 = vadd.f32 %v256, %v257
        %v259 = vrot.slane %v258, 2
        %v260 = vadd.f32 %v258, %v259
        %v261 = vrot.slane %v260, 1
        %v262 = vadd.f32 %v260, %v261
        %v263 = vsel %vm237, %v254, 0.0
        %v264 = vrot.slane %v263, 4
        %v265 = vadd.f32 %v263, %v264
        %v266 = vrot.slane %v265, 2
        %v267 = vadd.f32 %v265, %v266
        %v268 = vrot.slane %v267, 1
        %v269 = vadd.f32 %v267, %v268
        %v270 = vmul.f32 %v230, %v232
        %v272 = vcombine.high %v270, %v270
        %v274 = vsel %vm237, %v270, 0.0
        %v275 = vrot.slane %v274, 4
        %v276 = vadd.f32 %v274, %v275
        %v277 = vrot.slane %v276, 2
        %v278 = vadd.f32 %v276, %v277
        %v279 = vrot.slane %v278, 1
        %v280 = vadd.f32 %v278, %v279
        %v281 = vsel %vm237, %v272, 0.0
        %v282 = vrot.slane %v281, 4
        %v283 = vadd.f32 %v281, %v282
        %v284 = vrot.slane %v283, 2
        %v285 = vadd.f32 %v283, %v284
        %v286 = vrot.slane %v285, 1
        %v287 = vadd.f32 %v285, %v286
        %v288 = vrsqrt.pop %v244
        %v289 = vrsqrt.pop %v251
        %v290 = vmul.f32 %v280, %v288
        %v291 = vmul.f32 %v287, %v289
        %v292 = vrsqrt.pop %v262
        %v293 = vrsqrt.pop %v269
        %v294 = vmul.f32 %v290, %v292
        %v295 = vmul.f32 %v291, %v293
        %v296 = vld [vmem:[%s217] sm:$0x3]
        %v299 = vcombine.low %v294, %v295
        %v301 = vunpack.c.l.s4 1966171168
        %v302 = vunpack.c.0.s8 %v301
        %v303 = vlaneseq
        %v304 = vshrl.u32 %v303, 7
        %v305 = vsub.s32 %v302, %v304
        %v306 = vrot.slane %v299, %v305
        %v308 = vunpack.c.l.s4 1966171168
        %v309 = vunpack.c.0.s8 %v308
        %v310 = vlaneseq
        %v311 = vshrl.u32 %v310, 7
        %v312 = vsub.s32 %v309, %v311
        %v313 = vrot.slane %v306, %v312
        %v315 = vadd.f32 %v296, %v313
        %v316 = vlaneseq
        %vm317 = vcmp.ge.s32.totalorder %v316, 0
        %vm318 = vcmp.lt.s32.totalorder %v316, 256
        %vm319 = vmand %vm317, %vm318
        %320 = vst.msk [vmem:[%s217] sm:$0x3] %vm319, %v315
        %s321 = sand.u32 %s98, 1
        %s322 = scalar_lea.sflag [#allocation4], %s321
        %s323 = sand.u32 %s98, 1
        %s324 = smul.addr %s323, 2
        %s325 = scalar_lea.vmem [#allocation7], %s324
        // Predicated region
        $region41: #{tpu_custom_call.1} parent=27 // pred_check
          %p326 = pneg %p108
        $region42: #{tpu_custom_call.1} parent=27 // pred_check_branch
          %328 = sbr.rel (%p326) target = $region44
        $region43: #{tpu_custom_call.1} parent=27 // pred_region
          %s330 = ssub.s32 32, 32
          %331 = vsyncadd %s322, %s330
          %s332 = smul.addr %s26, 2
          %s333 = smul.addr %s332, 16
          %s334 = scalar_lea.hbm %s2, %s333
          %s336 = sshll.u32 %s325, 4
          %s337 = int_to_ptr.vmem [resolvable:$true] %s336
          %339 = dma.vmem_to_hbm [thread:$0]  %s337, 32, %s334, %s322
        $region44: #{tpu_custom_call.1} parent=27 // pred_fallthru
          _
      $region28: #{tpu_custom_call.1} parent=5 // pred_fallthru
        _
      %p340 = scmp.le.s32.totalorder 2, %s17
      // Predicated region
      $region45: #{tpu_custom_call.1} parent=5 // pred_check
        %p341 = pneg %p340
      $region46: #{tpu_custom_call.1} parent=5 // pred_check_branch
        %343 = sbr.rel (%p341) target = $region48
      $region47: #{tpu_custom_call.1} parent=5 // pred_region
        %s344 = ssub.s32 %s17, 2
        // Predicated region
        $region49: #{tpu_custom_call.1} parent=47 // pred_check
          %p345 = pneg %p114
        $region50: #{tpu_custom_call.1} parent=47 // pred_check_branch
          %347 = sbr.rel (%p345) target = $region52
        $region51: #{tpu_custom_call.1} parent=47 // pred_region
          %s348 = sand.u32 %s99, 1
          %s349 = scalar_lea.sflag [#allocation4], %s348
          %s350 = sand.u32 %s99, 1
          %s351 = smul.addr %s350, 2
          %s352 = scalar_lea.vmem [#allocation7], %s351
          %353 = dma.done %s349, 32
        $region52: #{tpu_custom_call.1} parent=47 // pred_fallthru
          _
      $region48: #{tpu_custom_call.1} parent=5 // pred_fallthru
        _
    $region6: #{tpu_custom_call.1} parent=1 // loop_footer
      %s21 = sadd.s32 1, %s17
    $region7: #{tpu_custom_call.1} parent=1 // loop_footer_branch
      %16 = sbr.rel target = $region3
    $region8: #{tpu_custom_call.1} parent=1 // loop_exit
      _
    %354 = vsyncpa [#allocation3], 1
    %s355 = scalar_lea.sflag [#allocation3], 1
    %356 = vsyncpa %s355, 1
    %357 = vsyncpa [#allocation6], 1
    %s358 = scalar_lea.sflag [#allocation6], 1
    %359 = vsyncpa %s358, 1
    %360 = vsyncpa [#allocation4], 1
    %s361 = scalar_lea.sflag [#allocation4], 1
    %362 = vsyncpa %s361, 1

</llo_original>
